<compile_context>
chip_gen: v5e
topology: v5e:2x2
jax: 0.10.0
libtpu: 0.0.40
codegen_flags: <defaults>
</compile_context>

<pallas_src>
import jax
import jax.numpy as jnp
from jax.experimental import pallas as pl
from jax.experimental.pallas import tpu as pltpu


def _round_up(a, m):
    return (a + m - 1) // m * m


def label_flip_head_kernel(x_ref, w1_ref, b1_ref, w2_ref, b2_ref, o_ref):
    # First linear on the MXU: (TNf, 128) bf16 @ (128, 128) bf16 -> f32.
    # The block-diagonal W1 computes FOLD logical rows per folded row at once.
    h = jnp.dot(x_ref[...], w1_ref[...], preferred_element_type=jnp.float32)
    h = h + b1_ref[...]                       # (1, 128) bias (b1 tiled xFOLD)
    # LeakyReLU(negative_slope=0.2)
    h = jnp.where(h >= 0, h, 0.2 * h)
    # Second linear as a block-diagonal (128, FOLD) matmul -> (TNf, FOLD);
    # column j holds the scalar output of logical row FOLD*i + j.
    out = jnp.dot(h.astype(jnp.bfloat16), w2_ref[...],
                  preferred_element_type=jnp.float32) + b2_ref[0, 0]
    o_ref[...] = out.astype(o_ref.dtype)


def label_flip_head(x, w1, b1, w2, b2, *, tn_rows=65536, min_grid=8):
    """x: (N, latent_dim) float -> (N, 1) f32.

    For best performance pass x already as bfloat16 (otherwise the cast runs
    as a separate XLA op in front of the kernel).
    """
    N, D = x.shape
    H = w1.shape[1]   # 32
    assert w1.shape == (D, H)
    assert b1.shape == (1, H)
    assert w2.shape == (H, 1)
    assert b2.shape == (1, 1)

    # Lane-dense fold: pack FOLD logical rows into one 128-lane physical row.
    FOLD = (128 // D) if (D <= 128 and 128 % D == 0) else 1
    Nf = pl.cdiv(N, FOLD)
    Npad = Nf * FOLD
    if Npad != N:
        x = jnp.pad(x, ((0, Npad - N), (0, 0)))
    x_folded = x.astype(jnp.bfloat16).reshape(Nf, FOLD * D)   # free reshape

    # Block-diagonal weights (tiny, built once per trace).
    eye = jnp.eye(FOLD, dtype=jnp.float32)
    w1_bd = jnp.kron(eye, w1.astype(jnp.float32)).astype(jnp.bfloat16)  # (FOLD*D, FOLD*H)
    w2_bd = jnp.kron(eye, w2.astype(jnp.float32)).astype(jnp.bfloat16)  # (FOLD*H, FOLD)
    b1_t = jnp.tile(b1.astype(jnp.float32), (1, FOLD))                  # (1, FOLD*H)
    b2_s = b2.astype(jnp.float32)                                       # (1, 1) -> SMEM

    # Folded-row tile size.  Block first dim is either a multiple of 16 (bf16
    # sublane packing) or equal to the full array dim (small-N single block).
    tgt = _round_up(max(16, tn_rows // FOLD), 16)
    if Nf <= tgt:
        if Nf >= 2 * 2048:
            # Split into >= 2 steps so both v7x TensorCores get work.
            TNf = _round_up(pl.cdiv(Nf, 2), 16)
        else:
            TNf = Nf                                   # single full block
    else:
        # Large N: at least `min_grid` steps, each at most `tgt` folded rows.
        TNf = max(16, min(tgt, _round_up(pl.cdiv(Nf, min_grid), 16)))
    grid = (pl.cdiv(Nf, TNf),)

    Dl = FOLD * D      # lane width of folded x (128 for latent_dim=32)
    Hl = FOLD * H      # lane width of folded hidden (128)

    cost = pl.CostEstimate(
        flops=2 * Npad * D * H + 2 * Npad * H,
        transcendentals=0,
        bytes_accessed=(Npad * D * 2) + (Dl * Hl * 2) + (Hl * 4)
                       + (Hl * FOLD * 2) + 4 + (Npad * 4),
    )

    out = pl.pallas_call(
        label_flip_head_kernel,
        out_shape=jax.ShapeDtypeStruct((Nf, FOLD), jnp.float32),
        grid_spec=pltpu.PrefetchScalarGridSpec(
            num_scalar_prefetch=0,
            grid=grid,
            in_specs=[
                pl.BlockSpec((TNf, Dl), lambda i: (i, 0)),          # x: streamed rows
                pl.BlockSpec((Dl, Hl), lambda i: (0, 0)),           # W1 block-diag, resident
                pl.BlockSpec((1, Hl), lambda i: (0, 0)),            # b1 tiled, resident
                pl.BlockSpec((Hl, FOLD), lambda i: (0, 0)),         # W2 block-diag, resident
                pl.BlockSpec(memory_space=pltpu.MemorySpace.SMEM),  # b2 scalar
            ],
            out_specs=pl.BlockSpec((TNf, FOLD), lambda i: (i, 0)),
        ),
        compiler_params=pltpu.CompilerParams(
            dimension_semantics=("parallel",)),
        cost_estimate=cost,
    )(x_folded, w1_bd, b1_t, w2_bd, b2_s)

    # (Nf, FOLD) -> (Npad, 1) is a zero-copy row-major reshape; drop pad rows.
    return out.reshape(Npad, 1)[:N]


def reference_f32(x, w1, b1, w2, b2):
    h = x @ w1 + b1
    h = jnp.where(h >= 0, h, 0.2 * h)
    return h @ w2 + b2


def reference_bf16(x, w1, b1, w2, b2):
    # Mirrors the kernel's precision: bf16 operands, f32 accumulation.
    h = jnp.dot(x.astype(jnp.bfloat16), w1.astype(jnp.bfloat16),
                preferred_element_type=jnp.float32) + b1
    h = jnp.where(h >= 0, h, 0.2 * h)
    return jnp.dot(h.astype(jnp.bfloat16), w2.astype(jnp.bfloat16),
                   preferred_element_type=jnp.float32) + b2


if __name__ == "__main__":
    # config['latent_dim'] = 32, batch of 8 nodes/samples.
    latent_dim = 32
    hidden = 32
    batch = 8

    key = jax.random.PRNGKey(0)
    kx, kw1, kb1, kw2, kb2 = jax.random.split(key, 5)

    x = jax.random.normal(kx, (batch, latent_dim), dtype=jnp.float32)

    # Deterministic synthetic params (PyTorch-Linear-like uniform init scale).
    bound1 = 1.0 / (latent_dim ** 0.5)
    w1 = jax.random.uniform(kw1, (latent_dim, hidden), jnp.float32, -bound1, bound1)
    b1 = jax.random.uniform(kb1, (1, hidden), jnp.float32, -bound1, bound1)
    bound2 = 1.0 / (hidden ** 0.5)
    w2 = jax.random.uniform(kw2, (hidden, 1), jnp.float32, -bound2, bound2)
    b2 = jax.random.uniform(kb2, (1, 1), jnp.float32, -bound2, bound2)

    def check(xa, **kw):
        out = jax.block_until_ready(label_flip_head(xa, w1, b1, w2, b2, **kw))
        assert out.shape == (xa.shape[0], 1)
        ref16 = reference_bf16(xa, w1, b1, w2, b2)
        ref32 = reference_f32(xa, w1, b1, w2, b2)
        assert jnp.allclose(out, ref16, atol=1e-2, rtol=1e-2), \
            float(jnp.max(jnp.abs(out - ref16)))
        assert jnp.allclose(out, ref32, atol=6e-2, rtol=6e-2), \
            float(jnp.max(jnp.abs(out - ref32)))

    # 1) Small batch: single full-block tile (batch=8 -> 2 folded rows).
    check(x)

    # 2) Multi-tile + remainder + row padding: grid of 8, partial last block.
    x2 = jax.random.normal(jax.random.PRNGKey(1), (1001, latent_dim), jnp.float32)
    check(x2, tn_rows=256)

    # 3) Two-step split path (>= 2 grid steps for v7x dual-TC at moderate N).
    x3 = jax.random.normal(jax.random.PRNGKey(2), (20000, latent_dim), jnp.float32)
    check(x3)

    print("KERNEL_OK")
</pallas_src>

<mosaic_0001>
module attributes {stable_mosaic.version = 11 : i64} {
  func.func @label_flip_head_kernel(%arg0: i32, %arg1: memref<2x128xbf16, #tpu.memory_space<vmem>>, %arg2: memref<128x128xbf16, #tpu.memory_space<vmem>>, %arg3: memref<1x128xf32, #tpu.memory_space<vmem>>, %arg4: memref<128x4xbf16, #tpu.memory_space<vmem>>, %arg5: memref<1x1xf32, #tpu.memory_space<smem>>, %arg6: memref<2x4xf32, #tpu.memory_space<vmem>>) attributes {dimension_semantics = [#tpu.dimension_semantics<parallel>], iteration_bounds = array<i64: 1>, scalar_prefetch = 0 : i64, scratch_operands = 0 : i64, tpu.core_type = #tpu.core_type<tc>, window_params = [{transform_indices = @transform_0, window_bounds = array<i64: 2, 128>}, {pipeline_mode = #tpu.pipeline_mode<synchronous>, transform_indices = @transform_1, window_bounds = array<i64: 128, 128>}, {pipeline_mode = #tpu.pipeline_mode<synchronous>, transform_indices = @transform_2, window_bounds = array<i64: 1, 128>}, {pipeline_mode = #tpu.pipeline_mode<synchronous>, transform_indices = @transform_3, window_bounds = array<i64: 128, 4>}, {transform_indices = @transform_4, window_bounds = array<i64: 1, 1>}, {transform_indices = @transform_5, window_bounds = array<i64: 2, 4>}]} {
    %c0 = arith.constant 0 : index
    %c0_0 = arith.constant 0 : index
    %0 = vector.load %arg1[%c0, %c0_0] : memref<2x128xbf16, #tpu.memory_space<vmem>>, vector<2x128xbf16>
    %c0_1 = arith.constant 0 : index
    %c0_2 = arith.constant 0 : index
    %1 = vector.load %arg2[%c0_1, %c0_2] : memref<128x128xbf16, #tpu.memory_space<vmem>>, vector<128x128xbf16>
    %cst = arith.constant dense<0.000000e+00> : vector<2x128xf32>
    %2 = tpu.matmul %0, %1, %cst {dimension_numbers = #tpu.dot_dimension_numbers<[1], [0], [0], [1], [0, 0, 1, 1], [], []>} : vector<2x128xbf16>, vector<128x128xbf16>, vector<2x128xf32> -> vector<2x128xf32>
    %c0_3 = arith.constant 0 : index
    %c0_4 = arith.constant 0 : index
    %3 = vector.load %arg3[%c0_3, %c0_4] : memref<1x128xf32, #tpu.memory_space<vmem>>, vector<1x128xf32>
    %4 = vector.broadcast %3 : vector<1x128xf32> to vector<2x128xf32>
    %5 = arith.addf %2, %4 : vector<2x128xf32>
    %cst_5 = arith.constant 0.000000e+00 : f32
    %6 = vector.broadcast %cst_5 : f32 to vector<2x128xf32>
    %7 = arith.cmpf oge, %5, %6 : vector<2x128xf32>
    %cst_6 = arith.constant 2.000000e-01 : f32
    %8 = vector.broadcast %cst_6 : f32 to vector<2x128xf32>
    %9 = arith.mulf %8, %5 : vector<2x128xf32>
    %10 = arith.select %7, %5, %9 : vector<2x128xi1>, vector<2x128xf32>
    %11 = arith.truncf %10 : vector<2x128xf32> to vector<2x128xbf16>
    %c0_7 = arith.constant 0 : index
    %c0_8 = arith.constant 0 : index
    %12 = vector.load %arg4[%c0_7, %c0_8] : memref<128x4xbf16, #tpu.memory_space<vmem>>, vector<128x4xbf16>
    %cst_9 = arith.constant dense<0.000000e+00> : vector<2x4xf32>
    %13 = tpu.matmul %11, %12, %cst_9 {dimension_numbers = #tpu.dot_dimension_numbers<[1], [0], [0], [1], [0, 0, 1, 1], [], []>} : vector<2x128xbf16>, vector<128x4xbf16>, vector<2x4xf32> -> vector<2x4xf32>
    %c0_10 = arith.constant 0 : index
    %c0_11 = arith.constant 0 : index
    %14 = memref.load %arg5[%c0_10, %c0_11] : memref<1x1xf32, #tpu.memory_space<smem>>
    %15 = vector.broadcast %14 : f32 to vector<2x4xf32>
    %16 = arith.addf %13, %15 : vector<2x4xf32>
    %c0_12 = arith.constant 0 : index
    %c0_13 = arith.constant 0 : index
    %17 = vector.load %arg6[%c0_12, %c0_13] : memref<2x4xf32, #tpu.memory_space<vmem>>, vector<2x4xf32>
    tpu.vector_store %arg6[%c0_12, %c0_13], %16 {strides = array<i32>} : memref<2x4xf32, #tpu.memory_space<vmem>>, vector<2x4xf32>,
    return
  }
  func.func @transform_0(%arg0: i32) -> (i32, i32) {
    %c0_i32 = arith.constant 0 : i32
    %c0_i32_0 = arith.constant 0 : i32
    return %arg0, %c0_i32 : i32, i32
  }
  func.func @transform_1(%arg0: i32) -> (i32, i32) {
    %c0_i32 = arith.constant 0 : i32
    %c0_i32_0 = arith.constant 0 : i32
    %c0_i32_1 = arith.constant 0 : i32
    return %c0_i32, %c0_i32_0 : i32, i32
  }
  func.func @transform_2(%arg0: i32) -> (i32, i32) {
    %c0_i32 = arith.constant 0 : i32
    %c0_i32_0 = arith.constant 0 : i32
    %c0_i32_1 = arith.constant 0 : i32
    return %c0_i32, %c0_i32_0 : i32, i32
  }
  func.func @transform_3(%arg0: i32) -> (i32, i32) {
    %c0_i32 = arith.constant 0 : i32
    %c0_i32_0 = arith.constant 0 : i32
    %c0_i32_1 = arith.constant 0 : i32
    return %c0_i32, %c0_i32_0 : i32, i32
  }
  func.func @transform_4(%arg0: i32) -> (i32, i32) {
    %c0_i32 = arith.constant 0 : i32
    %c0_i32_0 = arith.constant 0 : i32
    %c0_i32_1 = arith.constant 0 : i32
    return %c0_i32, %c0_i32_0 : i32, i32
  }
  func.func @transform_5(%arg0: i32) -> (i32, i32) {
    %c0_i32 = arith.constant 0 : i32
    %c0_i32_0 = arith.constant 0 : i32
    return %arg0, %c0_i32 : i32, i32
  }
}

</mosaic_0001>

<llo_original>
// kernel: tpu_custom_call.1
$region0: #{tpu_custom_call.1}
  #allocation0 [shape = 'u32[]', space=smem, size = 0x4, offset = 0x4, fixed_abs, tag = 'smem constant byte address 0x4 - core index']
  #allocation1 [shape = 'u32[72,128]{1,0:T(1,128)}', space=vmem, size = 0x9000, scoped, tag = 'internal scratch']
  #allocation2 [shape = 'f32[1,1]{1,0:T(1,128)S(6)}', space=smem, size = 0x200, scoped, tag = 'scoped memory for tpu_custom_call.1']
  %s0 = inlined_call_operand.vmem [shape: bf16[2,128], index: 0, kind: input, shape index: {}]
  %s1 = inlined_call_operand.vmem [shape: bf16[128,128], index: 1, kind: input, shape index: {}]
  %s2 = inlined_call_operand.vmem [shape: f32[1,128], index: 2, kind: input, shape index: {}]
  %s3 = inlined_call_operand.vmem [shape: bf16[128,4], index: 3, kind: input, shape index: {}]
  %s4 = inlined_call_operand.<no memory space> [shape: f32[1,1], index: 4, kind: input, shape index: {}]
  %s5 = inlined_call_operand.hbm [shape: f32[2,4], index: 5, kind: output, shape index: {}]
  %s6 = sld [smem:[#allocation0]]
  $region30: #{tpu_custom_call.1} parent=0
    _
  %s8 = ssub.s32 1, %s6
  %s9 = scalar_select 0, %s8, %s6
  %10 = sst [smem:[#allocation2]] %s4
  $region1: #{tpu_custom_call.1} parent=0
    #allocation3 [shape = 'u8[1024]{0}', space=vmem, size = 0x400, scoped, tag = 'output window, operand 0, single buffered']
    #allocation4 [shape = 's32[1]{0}', space=sflag, size = 0x4, scoped, tag = 'scoped memory for tpu_custom_call.1']
    %11 = vsyncpa [#allocation4], 0
    // Predicated region
    $region2: #{tpu_custom_call.1} parent=1 // pred_check
      _
    $region3: #{tpu_custom_call.1} parent=1 // pred_check_branch
      %13 = sbr.rel (0) target = $region5
    $region4: #{tpu_custom_call.1} parent=1 // pred_region
      _
    $region5: #{tpu_custom_call.1} parent=1 // pred_fallthru
      _
    // Predicated region
    $region6: #{tpu_custom_call.1} parent=1 // pred_check
      _
    $region7: #{tpu_custom_call.1} parent=1 // pred_check_branch
      %15 = sbr.rel (0) target = $region9
    $region8: #{tpu_custom_call.1} parent=1 // pred_region
      _
    $region9: #{tpu_custom_call.1} parent=1 // pred_fallthru
      _
    // Predicated region
    $region10: #{tpu_custom_call.1} parent=1 // pred_check
      _
    $region11: #{tpu_custom_call.1} parent=1 // pred_check_branch
      %17 = sbr.rel (0) target = $region13
    $region12: #{tpu_custom_call.1} parent=1 // pred_region
      _
    $region13: #{tpu_custom_call.1} parent=1 // pred_fallthru
      _
    // Predicated region
    $region14: #{tpu_custom_call.1} parent=1 // pred_check
      _
    $region15: #{tpu_custom_call.1} parent=1 // pred_check_branch
      %19 = sbr.rel (0) target = $region17
    $region16: #{tpu_custom_call.1} parent=1 // pred_region
      _
    $region17: #{tpu_custom_call.1} parent=1 // pred_fallthru
      _
    // Predicated region
    $region18: #{tpu_custom_call.1} parent=1 // pred_check
      _
    $region19: #{tpu_custom_call.1} parent=1 // pred_check_branch
      %21 = sbr.rel (0) target = $region21
    $region20: #{tpu_custom_call.1} parent=1 // pred_region
      _
    $region21: #{tpu_custom_call.1} parent=1 // pred_fallthru
      _
    %v22 = vld [vmem:[%s0] sm:$0x1]
    %v23 = vld [vmem:[%s1] sm:$0xf]
    %v24 = vld [vmem:[%s1 + $0x4] sm:$0xf]
    %v25 = vld [vmem:[%s1 + $0x8] sm:$0xf]
    %v26 = vld [vmem:[%s1 + $0xc] sm:$0xf]
    %v27 = vld [vmem:[%s1 + $0x10] sm:$0xf]
    %v28 = vld [vmem:[%s1 + $0x14] sm:$0xf]
    %v29 = vld [vmem:[%s1 + $0x18] sm:$0xf]
    %v30 = vld [vmem:[%s1 + $0x1c] sm:$0xf]
    %v31 = vld [vmem:[%s1 + $0x20] sm:$0xf]
    %v32 = vld [vmem:[%s1 + $0x24] sm:$0xf]
    %v33 = vld [vmem:[%s1 + $0x28] sm:$0xf]
    %v34 = vld [vmem:[%s1 + $0x2c] sm:$0xf]
    %v35 = vld [vmem:[%s1 + $0x30] sm:$0xf]
    %v36 = vld [vmem:[%s1 + $0x34] sm:$0xf]
    %v37 = vld [vmem:[%s1 + $0x38] sm:$0xf]
    %v38 = vld [vmem:[%s1 + $0x3c] sm:$0xf]
    %v39 = vld [vmem:[%s2] sm:$0x1]
    %v41 = vperm.slane %v39, 0
    %v59 = vunpack.c.l.b16 %v23
    %v60 = vunpack.c.l.b16 %v24
    %v61 = vunpack.c.l.b16 %v25
    %v62 = vunpack.c.l.b16 %v26
    %v63 = vunpack.c.l.b16 %v27
    %v64 = vunpack.c.l.b16 %v28
    %v65 = vunpack.c.l.b16 %v29
    %v66 = vunpack.c.l.b16 %v30
    %v67 = vunpack.c.l.b16 %v31
    %v68 = vunpack.c.l.b16 %v32
    %v69 = vunpack.c.l.b16 %v33
    %v70 = vunpack.c.l.b16 %v34
    %v71 = vunpack.c.l.b16 %v35
    %v72 = vunpack.c.l.b16 %v36
    %v73 = vunpack.c.l.b16 %v37
    %v74 = vunpack.c.l.b16 %v38
    %v75 = vpack.c.b16 %v60, %v59
    %v76 = vpack.c.b16 %v62, %v61
    %v77 = vpack.c.b16 %v64, %v63
    %v78 = vpack.c.b16 %v66, %v65
    %v79 = vpack.c.b16 %v68, %v67
    %v80 = vpack.c.b16 %v70, %v69
    %v81 = vpack.c.b16 %v72, %v71
    %v82 = vpack.c.b16 %v74, %v73
    %91 = vmatpush.bf16.msra.mxu0 %v82
    %92 = vmatpush.bf16.msra.mxu0 %v81
    %93 = vmatpush.bf16.msra.mxu0 %v80
    %94 = vmatpush.bf16.msra.mxu0 %v79
    %95 = vmatpush.bf16.msra.mxu0 %v78
    %96 = vmatpush.bf16.msra.mxu0 %v77
    %97 = vmatpush.bf16.msra.mxu0 %v76
    %98 = vmatpush.bf16.msra.mxu0 %v75
    %99 = vmatmul.bf16.gmra.mxu0 %v22
    %v100 = vpop.f32.mrf.mxu0
    %v101 = vadd.f32 %v41, %v100
    %v102 = vpop.f32.mrf.mxu0
    %103 = vdwg.mxu0
    %vm104 = vcmp.ge.f32.partialorder %v101, 0.0
    %v105 = vmul.f32 %v101, 0.2
    %v106 = vsel %vm104, %v101, %v105
    %v107 = vpack.c.bf16 %v106, %v106
    %v108 = vld [vmem:[%s3] sm:$0xf]
    %v109 = vld [vmem:[%s3 + $0x4] sm:$0xf]
    %v110 = vld [vmem:[%s3 + $0x8] sm:$0xf]
    %v111 = vld [vmem:[%s3 + $0xc] sm:$0xf]
    %v112 = vld [vmem:[%s3 + $0x10] sm:$0xf]
    %v113 = vld [vmem:[%s3 + $0x14] sm:$0xf]
    %v114 = vld [vmem:[%s3 + $0x18] sm:$0xf]
    %v115 = vld [vmem:[%s3 + $0x1c] sm:$0xf]
    %v116 = vld [vmem:[%s3 + $0x20] sm:$0xf]
    %v117 = vld [vmem:[%s3 + $0x24] sm:$0xf]
    %v118 = vld [vmem:[%s3 + $0x28] sm:$0xf]
    %v119 = vld [vmem:[%s3 + $0x2c] sm:$0xf]
    %v120 = vld [vmem:[%s3 + $0x30] sm:$0xf]
    %v121 = vld [vmem:[%s3 + $0x34] sm:$0xf]
    %v122 = vld [vmem:[%s3 + $0x38] sm:$0xf]
    %v123 = vld [vmem:[%s3 + $0x3c] sm:$0xf]
    %s124 = sld [smem:[#allocation2]]
    %v125 = vstv %s124
    %v142 = vunpack.c.l.b16 %v108
    %v143 = vunpack.c.l.b16 %v109
    %v144 = vunpack.c.l.b16 %v110
    %v145 = vunpack.c.l.b16 %v111
    %v146 = vunpack.c.l.b16 %v112
    %v147 = vunpack.c.l.b16 %v113
    %v148 = vunpack.c.l.b16 %v114
    %v149 = vunpack.c.l.b16 %v115
    %v150 = vunpack.c.l.b16 %v116
    %v151 = vunpack.c.l.b16 %v117
    %v152 = vunpack.c.l.b16 %v118
    %v153 = vunpack.c.l.b16 %v119
    %v154 = vunpack.c.l.b16 %v120
    %v155 = vunpack.c.l.b16 %v121
    %v156 = vunpack.c.l.b16 %v122
    %v157 = vunpack.c.l.b16 %v123
    %v158 = vpack.c.b16 %v143, %v142
    %v159 = vpack.c.b16 %v145, %v144
    %v160 = vpack.c.b16 %v147, %v146
    %v161 = vpack.c.b16 %v149, %v148
    %v162 = vpack.c.b16 %v151, %v150
    %v163 = vpack.c.b16 %v153, %v152
    %v164 = vpack.c.b16 %v155, %v154
    %v165 = vpack.c.b16 %v157, %v156
    %174 = vmatpush.bf16.msra.mxu0 %v165
    %175 = vmatpush.bf16.msra.mxu0 %v164
    %176 = vmatpush.bf16.msra.mxu0 %v163
    %177 = vmatpush.bf16.msra.mxu0 %v162
    %178 = vmatpush.bf16.msra.mxu0 %v161
    %179 = vmatpush.bf16.msra.mxu0 %v160
    %180 = vmatpush.bf16.msra.mxu0 %v159
    %181 = vmatpush.bf16.msra.mxu0 %v158
    %182 = vmatmul.bf16.gmra.mxu0 %v107
    %v183 = vpop.f32.mrf.mxu0
    %v184 = vadd.f32 %v125, %v183
    %v185 = vpop.f32.mrf.mxu0
    %186 = vdwg.mxu0
    %vm187 = vcmask 25600
    %188 = vst.msk [vmem:[#allocation3] sm:$0x3] %vm187, %v184
    // Predicated region
    $region22: #{tpu_custom_call.1} parent=1 // pred_check
      _
    $region23: #{tpu_custom_call.1} parent=1 // pred_check_branch
      %190 = sbr.rel (0) target = $region25
    $region24: #{tpu_custom_call.1} parent=1 // pred_region
      %192 = vsyncadd [#allocation4], 0
      %s194 = sshll.u32 [#allocation3], 4
      %s195 = int_to_ptr.vmem [resolvable:$true] %s194
      %s196 = sshll.u32 %s5, 4
      %s197 = int_to_ptr.hbm [resolvable:$true] %s196
      %199 = dma.vmem_to_hbm [thread:$0]  %s195, 32, %s197, [#allocation4]
    $region25: #{tpu_custom_call.1} parent=1 // pred_fallthru
      _
    // Predicated region
    $region26: #{tpu_custom_call.1} parent=1 // pred_check
      _
    $region27: #{tpu_custom_call.1} parent=1 // pred_check_branch
      %201 = sbr.rel (0) target = $region29
    $region28: #{tpu_custom_call.1} parent=1 // pred_region
      %203 = dma.done [#allocation4], 32
    $region29: #{tpu_custom_call.1} parent=1 // pred_fallthru
      _
    %204 = vsyncpa [#allocation4], 1

</llo_original>
